<compile_context>
chip_gen: v7x
topology: tpu7x:2x2x1
jax: 0.10.0
libtpu: 0.0.40
codegen_flags: <defaults>
</compile_context>

<pallas_src>
import functools

import jax
import jax.numpy as jnp
from jax import lax
from jax.experimental import pallas as pl
from jax.experimental.pallas import tpu as pltpu

# Scoped-VMEM cap for every pallas_call. Blocks here are tiny (<= ~2 MiB); for
# production-size activations raise this toward physical VMEM together with
# larger lane blocks / lane tiling.
_VMEM_LIMIT = 32 * 1024 * 1024
_MAX_LANE_BLOCK = 2048      # lane-axis tile for the GEMM kernel (multiple of 128)

# (n_convs of each DenseBlockEncoder, max-pool factor of the following
#  DenseTransitionBlockEncoder) -- fixed by waspDenseEncoder.
_BLOCK_CFG = ((6, 2), (12, 2), (24, 2), (16, 4))
_BN_EPS = 1e-5
_LEAKY_SLOPE = 0.2


def _apply_act(y, act, slope=_LEAKY_SLOPE):
    if act == "none":
        return y
    if act == "relu":
        return jnp.maximum(y, 0.0)
    if act == "leaky_relu":
        return jnp.where(y >= 0.0, y, slope * y)
    if act == "sigmoid":
        return jax.nn.sigmoid(y)
    raise ValueError(f"unknown activation: {act}")


# ---------------------------------------------------------------------------
# Kernel 1: fused  act( scale * (A(M,K) @ B(K,N)) + bias(M,1) ), lane-dense out.
# Used for every im2col conv and for the (stacked) Linear mixers.
# ---------------------------------------------------------------------------
def _matmul_bias_act_kernel(a_ref, b_ref, bias_ref, o_ref, *, act, scale):
    acc = jnp.dot(a_ref[...], b_ref[...], preferred_element_type=jnp.float32)
    if scale != 1.0:
        acc = acc * scale
    acc = acc + bias_ref[...]          # (M, 1) broadcast along lanes in-kernel
    o_ref[...] = _apply_act(acc, act)


def _pick_lane_block(n, max_lanes=_MAX_LANE_BLOCK):
    """Largest multiple-of-128 tile <= max_lanes that divides n, else full n."""
    if n <= max_lanes or n % 128 != 0:
        return n
    blk = (max_lanes // 128) * 128
    while blk >= 128:
        if n % blk == 0:
            return blk
        blk -= 128
    return n


def matmul_bias_act(a, b, bias, act="none", scale=1.0):
    """out = act(scale * (a @ b) + bias[:, None]);  a:(M,K), b:(K,N), bias:(M,)."""
    m, k = a.shape
    k2, n = b.shape
    assert k == k2
    bias2 = bias.reshape(m, 1).astype(jnp.float32)
    n_blk = _pick_lane_block(n)
    kernel = functools.partial(_matmul_bias_act_kernel, act=act, scale=scale)
    return pl.pallas_call(
        kernel,
        out_shape=jax.ShapeDtypeStruct((m, n), jnp.float32),
        grid_spec=pltpu.PrefetchScalarGridSpec(
            num_scalar_prefetch=0,
            grid=(n // n_blk,),
            in_specs=[
                pl.BlockSpec((m, k), lambda j: (0, 0)),       # weights stay resident
                pl.BlockSpec((k, n_blk), lambda j: (0, j)),   # lane-dense patch tiles
                pl.BlockSpec((m, 1), lambda j: (0, 0)),       # bias broadcast in-kernel
            ],
            out_specs=pl.BlockSpec((m, n_blk), lambda j: (0, j)),
        ),
        compiler_params=pltpu.CompilerParams(
            dimension_semantics=("parallel",),
            vmem_limit_bytes=_VMEM_LIMIT,
        ),
    )(a.astype(jnp.float32), b.astype(jnp.float32), bias2)


# ---------------------------------------------------------------------------
# Kernel 2: fused BatchNorm2d (training-mode batch statistics) + activation.
# Operates on the lane-dense (C, B*H*W) view; stats are a lane reduction.
# Used before the 3x3 / 4x4 convs (an im2col sits between BN+act and the GEMM).
# ---------------------------------------------------------------------------
def _bn_act_kernel(x_ref, gamma_ref, beta_ref, o_ref, *, act, eps, slope):
    x = x_ref[...]                                       # (C, N)
    mean = jnp.mean(x, axis=1, keepdims=True)            # (C, 1)
    cent = x - mean
    var = jnp.mean(cent * cent, axis=1, keepdims=True)   # biased var (train mode)
    inv = lax.rsqrt(var + eps)
    y = cent * (inv * gamma_ref[...]) + beta_ref[...]
    o_ref[...] = _apply_act(y, act, slope)


def bn_act(x_cbhw, gamma, beta, *, act):
    # TODO(synk): for production-size activations that exceed VMEM, tile the
    # batch-statistics reduction (two-pass or cross-block accumulation) instead
    # of a single whole-array block.
    c, b, h, w = x_cbhw.shape
    n = b * h * w
    x2 = x_cbhw.reshape(c, n).astype(jnp.float32)
    g2 = gamma.reshape(c, 1).astype(jnp.float32)
    b2 = beta.reshape(c, 1).astype(jnp.float32)
    kernel = functools.partial(_bn_act_kernel, act=act, eps=_BN_EPS, slope=_LEAKY_SLOPE)
    out = pl.pallas_call(
        kernel,
        out_shape=jax.ShapeDtypeStruct((c, n), jnp.float32),
        grid_spec=pltpu.PrefetchScalarGridSpec(
            num_scalar_prefetch=0,
            grid=(1,),
            in_specs=[
                pl.BlockSpec((c, n), lambda i: (0, 0)),
                pl.BlockSpec((c, 1), lambda i: (0, 0)),
                pl.BlockSpec((c, 1), lambda i: (0, 0)),
            ],
            out_specs=pl.BlockSpec((c, n), lambda i: (0, 0)),
        ),
        compiler_params=pltpu.CompilerParams(
            dimension_semantics=("arbitrary",),
            vmem_limit_bytes=_VMEM_LIMIT,
        ),
    )(x2, g2, b2)
    return out.reshape(c, b, h, w)


# ---------------------------------------------------------------------------
# Kernel 3: whole DenseTransitionBlockEncoder fused:
#   BatchNorm (batch stats) -> LeakyReLU(0.2) -> Conv1x1 -> MaxPool(mp)
#   [+ optional final Sigmoid of waspDenseEncoder].
# Input is reordered wrapper-side (pure layout) to (mp*mp, C_in, B*Ho*Wo);
# window-slice k holds pixel (di, dj) of every pooling window, so the 1x1 conv
# is a clean (C_out, C_in) @ (C_in, N) GEMM per slice and pooling is a running
# elementwise max over slices -- all of it stays in VMEM.
# ---------------------------------------------------------------------------
def _transition_kernel(x_ref, gamma_ref, beta_ref, w_ref, o_ref, *,
                       eps, slope, apply_sigmoid):
    x = x_ref[...]                                        # (ksq, C_in, N)
    ksq = x_ref.shape[0]
    n_tot = x_ref.shape[0] * x_ref.shape[2]
    # per-channel batch stats over (window-slice, lane) axes == over B*H*W
    s = jnp.sum(x, axis=0, keepdims=True)                 # (1, C_in, N)
    mean = jnp.sum(s, axis=2, keepdims=True) / n_tot      # (1, C_in, 1)
    cent = x - mean
    c2 = jnp.sum(cent * cent, axis=0, keepdims=True)
    var = jnp.sum(c2, axis=2, keepdims=True) / n_tot      # biased var (train mode)
    inv = lax.rsqrt(var + eps)
    y = cent * (inv * gamma_ref[...]) + beta_ref[...]     # params are (1, C_in, 1)
    y = jnp.where(y >= 0.0, y, slope * y)                 # LeakyReLU(0.2)

    w = w_ref[...]                                        # (C_out, C_in) resident
    acc = jnp.dot(w, y[0], preferred_element_type=jnp.float32)
    for k in range(1, ksq):                               # unrolled at trace time
        acc = jnp.maximum(acc, jnp.dot(w, y[k], preferred_element_type=jnp.float32))
    if apply_sigmoid:
        acc = jax.nn.sigmoid(acc)
    o_ref[...] = acc                                      # (C_out, N) lane-dense


def transition_block(x_cbhw, gamma, beta, weight, mp, *, apply_sigmoid):
    c_in, b, h, w = x_cbhw.shape
    c_out = weight.shape[0]
    ho, wo = h // mp, w // mp
    n = b * ho * wo
    ksq = mp * mp
    # layout plumbing (no FLOPs): (C,B,H,W) -> (mp*mp, C, B*Ho*Wo), window slices major
    x6 = x_cbhw.reshape(c_in, b, ho, mp, wo, mp)
    x3 = jnp.transpose(x6, (3, 5, 0, 1, 2, 4)).reshape(ksq, c_in, n).astype(jnp.float32)
    g3 = gamma.reshape(1, c_in, 1).astype(jnp.float32)
    b3 = beta.reshape(1, c_in, 1).astype(jnp.float32)
    w2 = weight.reshape(c_out, c_in).astype(jnp.float32)
    kernel = functools.partial(_transition_kernel, eps=_BN_EPS,
                               slope=_LEAKY_SLOPE, apply_sigmoid=apply_sigmoid)
    # TODO(synk): for production-size activations, tile the lane axis and make
    # the batch-statistics reduction two-pass; a single block suffices here.
    out = pl.pallas_call(
        kernel,
        out_shape=jax.ShapeDtypeStruct((c_out, n), jnp.float32),
        grid_spec=pltpu.PrefetchScalarGridSpec(
            num_scalar_prefetch=0,
            grid=(1,),
            in_specs=[
                pl.BlockSpec((ksq, c_in, n), lambda i: (0, 0, 0)),
                pl.BlockSpec((1, c_in, 1), lambda i: (0, 0, 0)),
                pl.BlockSpec((1, c_in, 1), lambda i: (0, 0, 0)),
                pl.BlockSpec((c_out, c_in), lambda i: (0, 0)),
            ],
            out_specs=pl.BlockSpec((c_out, n), lambda i: (0, 0)),
        ),
        compiler_params=pltpu.CompilerParams(
            dimension_semantics=("arbitrary",),
            vmem_limit_bytes=_VMEM_LIMIT,
        ),
    )(x3, g3, b3, w2)
    return out.reshape(c_out, b, ho, wo)


# ---------------------------------------------------------------------------
# Wrapper-side layout plumbing (im2col window gathering, no FLOPs).
# ---------------------------------------------------------------------------
def _im2col(x_cbhw, ksize, stride, padding):
    c, b, h, w = x_cbhw.shape
    ho = (h + 2 * padding - ksize) // stride + 1
    wo = (w + 2 * padding - ksize) // stride + 1
    if padding > 0:
        x_cbhw = jnp.pad(
            x_cbhw, ((0, 0), (0, 0), (padding, padding), (padding, padding)))
    cols = []
    for ki in range(ksize):
        for kj in range(ksize):
            cols.append(
                x_cbhw[:, :, ki:ki + stride * ho:stride, kj:kj + stride * wo:stride])
    patches = jnp.stack(cols, axis=1).reshape(c * ksize * ksize, b * ho * wo)
    return patches, ho, wo


def conv2d(x_cbhw, weight, bias, *, ksize, stride, padding, scale=1.0):
    """Conv2d on the channels-major (C, B, H, W) layout via im2col + Pallas GEMM."""
    c_in, b, h, w = x_cbhw.shape
    c_out = weight.shape[0]
    if ksize == 1 and stride == 1 and padding == 0:
        patches, ho, wo = x_cbhw.reshape(c_in, b * h * w), h, w
    else:
        patches, ho, wo = _im2col(x_cbhw, ksize, stride, padding)
    w2 = weight.reshape(c_out, c_in * ksize * ksize)
    if bias is None:
        bias = jnp.zeros((c_out,), jnp.float32)
    out = matmul_bias_act(w2, patches, bias, act="none", scale=scale)
    return out.reshape(c_out, b, ho, wo)


# ---------------------------------------------------------------------------
# Dense_Encoders forward (Pallas).
# ---------------------------------------------------------------------------
def dense_encoders_forward(params, x_bchw):
    b = x_bchw.shape[0]
    zdim = params["mixI_w"].shape[1]
    idim = params["mixI_w"].shape[0]
    x = jnp.transpose(x_bchw, (1, 0, 2, 3)).astype(jnp.float32)   # (C, B, H, W)

    # waspDenseEncoder stem: BatchNorm2d -> ReLU -> Conv2d(nc, ndf, 4, s=2, p=1)
    x = bn_act(x, params["bn0_g"], params["bn0_b"], act="relu")
    x = conv2d(x, params["conv0_w"], params["conv0_b"], ksize=4, stride=2, padding=1)

    n_blocks = len(params["blocks"])
    for i, (blk, (n_convs, mp)) in enumerate(zip(params["blocks"], _BLOCK_CFG)):
        # DenseBlockEncoder: only layer 0 acts; the summation collapses to a scale
        # applied inside the GEMM kernel epilogue.
        y = bn_act(x, blk["db_bn_g"], blk["db_bn_b"], act="relu")
        scale = 2.0 ** (n_convs - 2) if n_convs >= 2 else 1.0
        x = conv2d(y, blk["db_conv_w"], None, ksize=3, stride=1, padding=1, scale=scale)
        # DenseTransitionBlockEncoder (+ final Sigmoid on the last block): fully fused.
        x = transition_block(x, blk["tr_bn_g"], blk["tr_bn_b"], blk["tr_conv_w"], mp,
                             apply_sigmoid=(i == n_blocks - 1))

    # (zdim, B, 1, 1) -> (zdim, B); .view(-1, ndim) of the PyTorch module == transpose.
    assert x.shape[2] == 1 and x.shape[3] == 1
    zmat = x.reshape(zdim, b)                          # (zdim, B), sigmoid already applied
    z = jnp.transpose(zmat)                            # (B, zdim)

    # Both waspMixers fused into one GEMM+sigmoid: rows [0:idim) -> zImg, rest -> zWarp.
    w_cat = jnp.concatenate([params["mixI_w"], params["mixW_w"]], axis=0)
    b_cat = jnp.concatenate([params["mixI_b"], params["mixW_b"]], axis=0)
    out_t = matmul_bias_act(w_cat, zmat, b_cat, act="sigmoid")   # (idim+wdim, B)
    z_img = jnp.transpose(out_t[:idim])
    z_warp = jnp.transpose(out_t[idim:])
    return z, z_img, z_warp


# ---------------------------------------------------------------------------
# Parameters and a pure-JAX reference for the correctness check.
# ---------------------------------------------------------------------------
def init_params(key, nc, ndf, zdim, idim, wdim):
    keys = iter(jax.random.split(key, 40))

    def nrm(shape, scale):
        return scale * jax.random.normal(next(keys), shape, dtype=jnp.float32)

    params = {
        "bn0_g": 1.0 + nrm((nc,), 0.1), "bn0_b": nrm((nc,), 0.1),
        "conv0_w": nrm((ndf, nc, 4, 4), (nc * 16) ** -0.5), "conv0_b": nrm((ndf,), 0.1),
        "blocks": [],
        "mixI_w": nrm((idim, zdim), zdim ** -0.5), "mixI_b": nrm((idim,), 0.1),
        "mixW_w": nrm((wdim, zdim), zdim ** -0.5), "mixW_b": nrm((wdim,), 0.1),
    }
    c_in = ndf
    c_outs = (ndf * 2, ndf * 4, ndf * 8, zdim)
    for (_, _), c_out in zip(_BLOCK_CFG, c_outs):
        params["blocks"].append({
            "db_bn_g": 1.0 + nrm((c_in,), 0.1), "db_bn_b": nrm((c_in,), 0.1),
            "db_conv_w": nrm((c_in, c_in, 3, 3), (c_in * 9) ** -0.5),
            "tr_bn_g": 1.0 + nrm((c_in,), 0.1), "tr_bn_b": nrm((c_in,), 0.1),
            "tr_conv_w": nrm((c_out, c_in, 1, 1), c_in ** -0.5),
        })
        c_in = c_out
    return params


def reference_forward(params, x_bchw, zdim):
    def bn(x, g, b):
        mean = jnp.mean(x, axis=(0, 2, 3), keepdims=True)
        var = jnp.mean((x - mean) ** 2, axis=(0, 2, 3), keepdims=True)
        return ((x - mean) / jnp.sqrt(var + _BN_EPS)) * g.reshape(1, -1, 1, 1) \
            + b.reshape(1, -1, 1, 1)

    def conv(x, w, b, stride, padding):
        out = lax.conv_general_dilated(
            x, w, (stride, stride), [(padding, padding), (padding, padding)],
            dimension_numbers=("NCHW", "OIHW", "NCHW"),
            precision=lax.Precision.HIGHEST)
        return out if b is None else out + b.reshape(1, -1, 1, 1)

    def pool(x, mp):
        bb, cc, hh, ww = x.shape
        return jnp.max(x.reshape(bb, cc, hh // mp, mp, ww // mp, mp), axis=(3, 5))

    x = x_bchw.astype(jnp.float32)
    x = conv(jnp.maximum(bn(x, params["bn0_g"], params["bn0_b"]), 0.0),
             params["conv0_w"], params["conv0_b"], 2, 1)
    for blk, (n_convs, mp) in zip(params["blocks"], _BLOCK_CFG):
        y = jnp.maximum(bn(x, blk["db_bn_g"], blk["db_bn_b"]), 0.0)
        scale = 2.0 ** (n_convs - 2) if n_convs >= 2 else 1.0
        x = conv(y, blk["db_conv_w"], None, 1, 1) * scale
        y = bn(x, blk["tr_bn_g"], blk["tr_bn_b"])
        y = jnp.where(y >= 0.0, y, _LEAKY_SLOPE * y)
        x = pool(conv(y, blk["tr_conv_w"], None, 1, 0), mp)
    z = jax.nn.sigmoid(x).reshape(-1, zdim)

    def mix(zz, w, b):
        return jax.nn.sigmoid(jnp.dot(zz, w.T, precision=lax.Precision.HIGHEST) + b)

    return z, mix(z, params["mixI_w"], params["mixI_b"]), mix(z, params["mixW_w"], params["mixW_b"])


if __name__ == "__main__":
    # Small config consistent with the module structure: the encoder ends with a
    # stride-2 conv, three MaxPool2d(2) and one MaxPool2d(4), so the smallest
    # clean input spatial size is 64.
    B, nc, ndf, zdim, idim, wdim = 2, 1, 8, 32, 16, 16
    H = W = 64

    key = jax.random.PRNGKey(0)
    k_par, k_in = jax.random.split(key)
    params = init_params(k_par, nc, ndf, zdim, idim, wdim)
    x = jax.random.uniform(k_in, (B, nc, H, W), dtype=jnp.float32)

    z, z_img, z_warp = jax.block_until_ready(dense_encoders_forward(params, x))
    assert z.shape == (B, zdim) and z_img.shape == (B, idim) and z_warp.shape == (B, wdim)

    z_r, z_img_r, z_warp_r = reference_forward(params, x, zdim)
    for got, ref, name in ((z, z_r, "z"), (z_img, z_img_r, "zImg"), (z_warp, z_warp_r, "zWarp")):
        assert jnp.allclose(got, ref, atol=3e-3, rtol=3e-3), f"mismatch vs reference in {name}"

    print("KERNEL_OK")
</pallas_src>

<mosaic_0001>
module attributes {stable_mosaic.version = 11 : i64} {
  func.func @_bn_act_kernel(%arg0: i32, %arg1: memref<1x8192xf32, #tpu.memory_space<vmem>>, %arg2: memref<1x1xf32, #tpu.memory_space<vmem>>, %arg3: memref<1x1xf32, #tpu.memory_space<vmem>>, %arg4: memref<1x8192xf32, #tpu.memory_space<vmem>>) attributes {dimension_semantics = [#tpu.dimension_semantics<arbitrary>], iteration_bounds = array<i64: 1>, scalar_prefetch = 0 : i64, scratch_operands = 0 : i64, tpu.core_type = #tpu.core_type<tc>, window_params = [{pipeline_mode = #tpu.pipeline_mode<synchronous>, transform_indices = @transform_0, window_bounds = array<i64: 1, 8192>}, {pipeline_mode = #tpu.pipeline_mode<synchronous>, transform_indices = @transform_1, window_bounds = array<i64: 1, 1>}, {pipeline_mode = #tpu.pipeline_mode<synchronous>, transform_indices = @transform_2, window_bounds = array<i64: 1, 1>}, {pipeline_mode = #tpu.pipeline_mode<synchronous>, transform_indices = @transform_3, window_bounds = array<i64: 1, 8192>}]} {
    %c0 = arith.constant 0 : index
    %c0_0 = arith.constant 0 : index
    %0 = vector.load %arg1[%c0, %c0_0] : memref<1x8192xf32, #tpu.memory_space<vmem>>, vector<1x8192xf32>
    %cst = arith.constant dense<0.000000e+00> : vector<1xf32>
    %1 = vector.multi_reduction <add>, %0, %cst [1] : vector<1x8192xf32> to vector<1xf32>
    %2 = vector.shape_cast %1 : vector<1xf32> to vector<1x1xf32>
    %cst_1 = arith.constant 8.192000e+03 : f32
    %3 = vector.broadcast %cst_1 : f32 to vector<1x1xf32>
    %4 = arith.divf %2, %3 : vector<1x1xf32>
    %5 = vector.broadcast %4 : vector<1x1xf32> to vector<1x8192xf32>
    %6 = arith.subf %0, %5 : vector<1x8192xf32>
    %7 = arith.mulf %6, %6 : vector<1x8192xf32>
    %cst_2 = arith.constant dense<0.000000e+00> : vector<1xf32>
    %8 = vector.multi_reduction <add>, %7, %cst_2 [1] : vector<1x8192xf32> to vector<1xf32>
    %9 = vector.shape_cast %8 : vector<1xf32> to vector<1x1xf32>
    %cst_3 = arith.constant 8.192000e+03 : f32
    %10 = vector.broadcast %cst_3 : f32 to vector<1x1xf32>
    %11 = arith.divf %9, %10 : vector<1x1xf32>
    %cst_4 = arith.constant 9.99999974E-6 : f32
    %12 = vector.broadcast %cst_4 : f32 to vector<1x1xf32>
    %13 = arith.addf %11, %12 : vector<1x1xf32>
    %14 = math.rsqrt %13 : vector<1x1xf32>
    %c0_5 = arith.constant 0 : index
    %c0_6 = arith.constant 0 : index
    %15 = vector.load %arg2[%c0_5, %c0_6] : memref<1x1xf32, #tpu.memory_space<vmem>>, vector<1x1xf32>
    %16 = arith.mulf %14, %15 : vector<1x1xf32>
    %17 = vector.broadcast %16 : vector<1x1xf32> to vector<1x8192xf32>
    %18 = arith.mulf %6, %17 : vector<1x8192xf32>
    %c0_7 = arith.constant 0 : index
    %c0_8 = arith.constant 0 : index
    %19 = vector.load %arg3[%c0_7, %c0_8] : memref<1x1xf32, #tpu.memory_space<vmem>>, vector<1x1xf32>
    %20 = vector.broadcast %19 : vector<1x1xf32> to vector<1x8192xf32>
    %21 = arith.addf %18, %20 : vector<1x8192xf32>
    %cst_9 = arith.constant 0.000000e+00 : f32
    %22 = vector.broadcast %cst_9 : f32 to vector<1x8192xf32>
    %23 = arith.maximumf %21, %22 : vector<1x8192xf32>
    %c0_10 = arith.constant 0 : index
    %c0_11 = arith.constant 0 : index
    %24 = vector.load %arg4[%c0_10, %c0_11] : memref<1x8192xf32, #tpu.memory_space<vmem>>, vector<1x8192xf32>
    tpu.vector_store %arg4[%c0_10, %c0_11], %23 {strides = array<i32>} : memref<1x8192xf32, #tpu.memory_space<vmem>>, vector<1x8192xf32>,
    return
  }
  func.func @transform_0(%arg0: i32) -> (i32, i32) {
    %c0_i32 = arith.constant 0 : i32
    %c0_i32_0 = arith.constant 0 : i32
    %c0_i32_1 = arith.constant 0 : i32
    return %c0_i32, %c0_i32_0 : i32, i32
  }
  func.func @transform_1(%arg0: i32) -> (i32, i32) {
    %c0_i32 = arith.constant 0 : i32
    %c0_i32_0 = arith.constant 0 : i32
    %c0_i32_1 = arith.constant 0 : i32
    return %c0_i32, %c0_i32_0 : i32, i32
  }
  func.func @transform_2(%arg0: i32) -> (i32, i32) {
    %c0_i32 = arith.constant 0 : i32
    %c0_i32_0 = arith.constant 0 : i32
    %c0_i32_1 = arith.constant 0 : i32
    return %c0_i32, %c0_i32_0 : i32, i32
  }
  func.func @transform_3(%arg0: i32) -> (i32, i32) {
    %c0_i32 = arith.constant 0 : i32
    %c0_i32_0 = arith.constant 0 : i32
    %c0_i32_1 = arith.constant 0 : i32
    return %c0_i32, %c0_i32_0 : i32, i32
  }
}

</mosaic_0001>

<llo_original>
// kernel: tpu_custom_call.1
$region0: #{tpu_custom_call.1}
  #allocation0 [shape = 'u32[]', space=smem, size = 0x4, offset = 0x4, fixed_abs, tag = 'smem constant byte address 0x4 - core index']
  #allocation1 [shape = 'u32[144,128]{1,0:T(1,128)}', space=vmem, size = 0x12000, scoped, tag = 'internal scratch']
  #allocation2 [shape = 'f32[1,1]{1,0:T(1,128)S(1)}', space=vmem, size = 0x200, scoped, tag = 'scoped memory for tpu_custom_call.1']
  #allocation3 [shape = 'f32[1,1]{1,0:T(1,128)S(1)}', space=vmem, size = 0x200, scoped, tag = 'scoped memory for tpu_custom_call.1']
  %s0 = inlined_call_operand.hbm [shape: f32[1,8192], index: 0, kind: input, shape index: {}]
  %s1 = inlined_call_operand.<no memory space> [shape: f32[1,1], index: 1, kind: input, shape index: {}]
  %s2 = inlined_call_operand.<no memory space> [shape: f32[1,1], index: 2, kind: input, shape index: {}]
  %s3 = inlined_call_operand.hbm [shape: f32[1,8192], index: 3, kind: output, shape index: {}]
  %s4 = sld [smem:[#allocation0]]
  $region26: #{tpu_custom_call.1} parent=0
    _
  %s6 = ssub.s32 1, %s4
  %s7 = scalar_select 0, %s6, %s4
  %v8 = vstv %s1
  %9 = vst [vmem:[#allocation2] sm:$0x1] %v8
  %v10 = vstv %s2
  %11 = vst [vmem:[#allocation3] sm:$0x1] %v10
  $region1: #{tpu_custom_call.1} parent=0
    #allocation4 [shape = 'u8[32768]{0}', space=vmem, size = 0x8000, scoped, tag = 'input window, operand 0, single buffered']
    #allocation5 [shape = 's32[1]{0}', space=sflag, size = 0x4, scoped, tag = 'scoped memory for tpu_custom_call.1']
    #allocation6 [shape = 's32[1]{0}', space=sflag, size = 0x4, scoped, tag = 'scoped memory for tpu_custom_call.1']
    #allocation7 [shape = 'u8[32768]{0}', space=vmem, size = 0x8000, scoped, tag = 'output window, operand 0, single buffered']
    %12 = vsyncpa [#allocation5], 0
    %13 = vsyncpa [#allocation6], 0
    // Predicated region
    $region2: #{tpu_custom_call.1} parent=1 // pred_check
      _
    $region3: #{tpu_custom_call.1} parent=1 // pred_check_branch
      %15 = sbr.rel (0) target = $region5
    $region4: #{tpu_custom_call.1} parent=1 // pred_region
      %s17 = ssub.s32 1024, 1024
      %18 = vsyncadd [#allocation5], %s17
      %s20 = sshll.u32 [#allocation4], 4
      %s21 = int_to_ptr.vmem [resolvable:$true] %s20
      %23 = dma.hbm_to_vmem [thread:$0]  %s0, 1024, %s21, [#allocation5]
    $region5: #{tpu_custom_call.1} parent=1 // pred_fallthru
      _
    // Predicated region
    $region6: #{tpu_custom_call.1} parent=1 // pred_check
      _
    $region7: #{tpu_custom_call.1} parent=1 // pred_check_branch
      %25 = sbr.rel (0) target = $region9
    $region8: #{tpu_custom_call.1} parent=1 // pred_region
      _
    $region9: #{tpu_custom_call.1} parent=1 // pred_fallthru
      _
    // Predicated region
    $region10: #{tpu_custom_call.1} parent=1 // pred_check
      _
    $region11: #{tpu_custom_call.1} parent=1 // pred_check_branch
      %27 = sbr.rel (0) target = $region13
    $region12: #{tpu_custom_call.1} parent=1 // pred_region
      _
    $region13: #{tpu_custom_call.1} parent=1 // pred_fallthru
      _
    // Predicated region
    $region14: #{tpu_custom_call.1} parent=1 // pred_check
      _
    $region15: #{tpu_custom_call.1} parent=1 // pred_check_branch
      %29 = sbr.rel (0) target = $region17
    $region16: #{tpu_custom_call.1} parent=1 // pred_region
      %30 = dma.done [#allocation5], 1024
    $region17: #{tpu_custom_call.1} parent=1 // pred_fallthru
      _
    %v31 = vld [vmem:[#allocation4] sm:$0xff]
    %v32 = vld [vmem:[#allocation4 + $0x8] sm:$0xff]
    %v33 = vld [vmem:[#allocation4 + $0x10] sm:$0xff]
    %v34 = vld [vmem:[#allocation4 + $0x18] sm:$0xff]
    %v35 = vld [vmem:[#allocation4 + $0x20] sm:$0xff]
    %v36 = vld [vmem:[#allocation4 + $0x28] sm:$0xff]
    %v37 = vld [vmem:[#allocation4 + $0x30] sm:$0xff]
    %v38 = vld [vmem:[#allocation4 + $0x38] sm:$0xff]
    %v47 = vlaneseq
    %v48 = vshrl.u32 %v47, 7
    %v49 = vsub.s32 0, %v48
    %v50 = vrot.slane %v31, %v49
    %v51 = vlaneseq
    %v52 = vshrl.u32 %v51, 7
    %v53 = vsub.s32 1, %v52
    %v54 = vrot.slane %v31, %v53
    %v55 = vlaneseq
    %v56 = vshrl.u32 %v55, 7
    %v57 = vsub.s32 2, %v56
    %v58 = vrot.slane %v31, %v57
    %v59 = vlaneseq
    %v60 = vshrl.u32 %v59, 7
    %v61 = vsub.s32 3, %v60
    %v62 = vrot.slane %v31, %v61
    %v63 = vlaneseq
    %v64 = vshrl.u32 %v63, 7
    %v65 = vsub.s32 4, %v64
    %v66 = vrot.slane %v31, %v65
    %v67 = vlaneseq
    %v68 = vshrl.u32 %v67, 7
    %v69 = vsub.s32 5, %v68
    %v70 = vrot.slane %v31, %v69
    %v71 = vlaneseq
    %v72 = vshrl.u32 %v71, 7
    %v73 = vsub.s32 6, %v72
    %v74 = vrot.slane %v31, %v73
    %v75 = vlaneseq
    %v76 = vshrl.u32 %v75, 7
    %v77 = vsub.s32 7, %v76
    %v78 = vrot.slane %v31, %v77
    %v79 = vlaneseq
    %v80 = vshrl.u32 %v79, 7
    %v81 = vsub.s32 0, %v80
    %v82 = vrot.slane %v32, %v81
    %v83 = vlaneseq
    %v84 = vshrl.u32 %v83, 7
    %v85 = vsub.s32 1, %v84
    %v86 = vrot.slane %v32, %v85
    %v87 = vlaneseq
    %v88 = vshrl.u32 %v87, 7
    %v89 = vsub.s32 2, %v88
    %v90 = vrot.slane %v32, %v89
    %v91 = vlaneseq
    %v92 = vshrl.u32 %v91, 7
    %v93 = vsub.s32 3, %v92
    %v94 = vrot.slane %v32, %v93
    %v95 = vlaneseq
    %v96 = vshrl.u32 %v95, 7
    %v97 = vsub.s32 4, %v96
    %v98 = vrot.slane %v32, %v97
    %v99 = vlaneseq
    %v100 = vshrl.u32 %v99, 7
    %v101 = vsub.s32 5, %v100
    %v102 = vrot.slane %v32, %v101
    %v103 = vlaneseq
    %v104 = vshrl.u32 %v103, 7
    %v105 = vsub.s32 6, %v104
    %v106 = vrot.slane %v32, %v105
    %v107 = vlaneseq
    %v108 = vshrl.u32 %v107, 7
    %v109 = vsub.s32 7, %v108
    %v110 = vrot.slane %v32, %v109
    %v111 = vlaneseq
    %v112 = vshrl.u32 %v111, 7
    %v113 = vsub.s32 0, %v112
    %v114 = vrot.slane %v33, %v113
    %v115 = vlaneseq
    %v116 = vshrl.u32 %v115, 7
    %v117 = vsub.s32 1, %v116
    %v118 = vrot.slane %v33, %v117
    %v119 = vlaneseq
    %v120 = vshrl.u32 %v119, 7
    %v121 = vsub.s32 2, %v120
    %v122 = vrot.slane %v33, %v121
    %v123 = vlaneseq
    %v124 = vshrl.u32 %v123, 7
    %v125 = vsub.s32 3, %v124
    %v126 = vrot.slane %v33, %v125
    %v127 = vlaneseq
    %v128 = vshrl.u32 %v127, 7
    %v129 = vsub.s32 4, %v128
    %v130 = vrot.slane %v33, %v129
    %v131 = vlaneseq
    %v132 = vshrl.u32 %v131, 7
    %v133 = vsub.s32 5, %v132
    %v134 = vrot.slane %v33, %v133
    %v135 = vlaneseq
    %v136 = vshrl.u32 %v135, 7
    %v137 = vsub.s32 6, %v136
    %v138 = vrot.slane %v33, %v137
    %v139 = vlaneseq
    %v140 = vshrl.u32 %v139, 7
    %v141 = vsub.s32 7, %v140
    %v142 = vrot.slane %v33, %v141
    %v143 = vlaneseq
    %v144 = vshrl.u32 %v143, 7
    %v145 = vsub.s32 0, %v144
    %v146 = vrot.slane %v34, %v145
    %v147 = vlaneseq
    %v148 = vshrl.u32 %v147, 7
    %v149 = vsub.s32 1, %v148
    %v150 = vrot.slane %v34, %v149
    %v151 = vlaneseq
    %v152 = vshrl.u32 %v151, 7
    %v153 = vsub.s32 2, %v152
    %v154 = vrot.slane %v34, %v153
    %v155 = vlaneseq
    %v156 = vshrl.u32 %v155, 7
    %v157 = vsub.s32 3, %v156
    %v158 = vrot.slane %v34, %v157
    %v159 = vlaneseq
    %v160 = vshrl.u32 %v159, 7
    %v161 = vsub.s32 4, %v160
    %v162 = vrot.slane %v34, %v161
    %v163 = vlaneseq
    %v164 = vshrl.u32 %v163, 7
    %v165 = vsub.s32 5, %v164
    %v166 = vrot.slane %v34, %v165
    %v167 = vlaneseq
    %v168 = vshrl.u32 %v167, 7
    %v169 = vsub.s32 6, %v168
    %v170 = vrot.slane %v34, %v169
    %v171 = vlaneseq
    %v172 = vshrl.u32 %v171, 7
    %v173 = vsub.s32 7, %v172
    %v174 = vrot.slane %v34, %v173
    %v175 = vlaneseq
    %v176 = vshrl.u32 %v175, 7
    %v177 = vsub.s32 0, %v176
    %v178 = vrot.slane %v35, %v177
    %v179 = vlaneseq
    %v180 = vshrl.u32 %v179, 7
    %v181 = vsub.s32 1, %v180
    %v182 = vrot.slane %v35, %v181
    %v183 = vlaneseq
    %v184 = vshrl.u32 %v183, 7
    %v185 = vsub.s32 2, %v184
    %v186 = vrot.slane %v35, %v185
    %v187 = vlaneseq
    %v188 = vshrl.u32 %v187, 7
    %v189 = vsub.s32 3, %v188
    %v190 = vrot.slane %v35, %v189
    %v191 = vlaneseq
    %v192 = vshrl.u32 %v191, 7
    %v193 = vsub.s32 4, %v192
    %v194 = vrot.slane %v35, %v193
    %v195 = vlaneseq
    %v196 = vshrl.u32 %v195, 7
    %v197 = vsub.s32 5, %v196
    %v198 = vrot.slane %v35, %v197
    %v199 = vlaneseq
    %v200 = vshrl.u32 %v199, 7
    %v201 = vsub.s32 6, %v200
    %v202 = vrot.slane %v35, %v201
    %v203 = vlaneseq
    %v204 = vshrl.u32 %v203, 7
    %v205 = vsub.s32 7, %v204
    %v206 = vrot.slane %v35, %v205
    %v207 = vlaneseq
    %v208 = vshrl.u32 %v207, 7
    %v209 = vsub.s32 0, %v208
    %v210 = vrot.slane %v36, %v209
    %v211 = vlaneseq
    %v212 = vshrl.u32 %v211, 7
    %v213 = vsub.s32 1, %v212
    %v214 = vrot.slane %v36, %v213
    %v215 = vlaneseq
    %v216 = vshrl.u32 %v215, 7
    %v217 = vsub.s32 2, %v216
    %v218 = vrot.slane %v36, %v217
    %v219 = vlaneseq
    %v220 = vshrl.u32 %v219, 7
    %v221 = vsub.s32 3, %v220
    %v222 = vrot.slane %v36, %v221
    %v223 = vlaneseq
    %v224 = vshrl.u32 %v223, 7
    %v225 = vsub.s32 4, %v224
    %v226 = vrot.slane %v36, %v225
    %v227 = vlaneseq
    %v228 = vshrl.u32 %v227, 7
    %v229 = vsub.s32 5, %v228
    %v230 = vrot.slane %v36, %v229
    %v231 = vlaneseq
    %v232 = vshrl.u32 %v231, 7
    %v233 = vsub.s32 6, %v232
    %v234 = vrot.slane %v36, %v233
    %v235 = vlaneseq
    %v236 = vshrl.u32 %v235, 7
    %v237 = vsub.s32 7, %v236
    %v238 = vrot.slane %v36, %v237
    %v239 = vlaneseq
    %v240 = vshrl.u32 %v239, 7
    %v241 = vsub.s32 0, %v240
    %v242 = vrot.slane %v37, %v241
    %v243 = vlaneseq
    %v244 = vshrl.u32 %v243, 7
    %v245 = vsub.s32 1, %v244
    %v246 = vrot.slane %v37, %v245
    %v247 = vlaneseq
    %v248 = vshrl.u32 %v247, 7
    %v249 = vsub.s32 2, %v248
    %v250 = vrot.slane %v37, %v249
    %v251 = vlaneseq
    %v252 = vshrl.u32 %v251, 7
    %v253 = vsub.s32 3, %v252
    %v254 = vrot.slane %v37, %v253
    %v255 = vlaneseq
    %v256 = vshrl.u32 %v255, 7
    %v257 = vsub.s32 4, %v256
    %v258 = vrot.slane %v37, %v257
    %v259 = vlaneseq
    %v260 = vshrl.u32 %v259, 7
    %v261 = vsub.s32 5, %v260
    %v262 = vrot.slane %v37, %v261
    %v263 = vlaneseq
    %v264 = vshrl.u32 %v263, 7
    %v265 = vsub.s32 6, %v264
    %v266 = vrot.slane %v37, %v265
    %v267 = vlaneseq
    %v268 = vshrl.u32 %v267, 7
    %v269 = vsub.s32 7, %v268
    %v270 = vrot.slane %v37, %v269
    %v271 = vlaneseq
    %v272 = vshrl.u32 %v271, 7
    %v273 = vsub.s32 0, %v272
    %v274 = vrot.slane %v38, %v273
    %v275 = vlaneseq
    %v276 = vshrl.u32 %v275, 7
    %v277 = vsub.s32 1, %v276
    %v278 = vrot.slane %v38, %v277
    %v279 = vlaneseq
    %v280 = vshrl.u32 %v279, 7
    %v281 = vsub.s32 2, %v280
    %v282 = vrot.slane %v38, %v281
    %v283 = vlaneseq
    %v284 = vshrl.u32 %v283, 7
    %v285 = vsub.s32 3, %v284
    %v286 = vrot.slane %v38, %v285
    %v287 = vlaneseq
    %v288 = vshrl.u32 %v287, 7
    %v289 = vsub.s32 4, %v288
    %v290 = vrot.slane %v38, %v289
    %v291 = vlaneseq
    %v292 = vshrl.u32 %v291, 7
    %v293 = vsub.s32 5, %v292
    %v294 = vrot.slane %v38, %v293
    %v295 = vlaneseq
    %v296 = vshrl.u32 %v295, 7
    %v297 = vsub.s32 6, %v296
    %v298 = vrot.slane %v38, %v297
    %v299 = vlaneseq
    %v300 = vshrl.u32 %v299, 7
    %v301 = vsub.s32 7, %v300
    %v302 = vrot.slane %v38, %v301
    %vm367 = vcmask 1040384
    %v368 = vsel %vm367, %v50, 0.0
    %v369 = vsel %vm367, %v54, 0.0
    %v370 = vadd.f32 %v368, %v369
    %v371 = vsel %vm367, %v58, 0.0
    %v372 = vadd.f32 %v370, %v371
    %v373 = vsel %vm367, %v62, 0.0
    %v374 = vadd.f32 %v372, %v373
    %v375 = vsel %vm367, %v66, 0.0
    %v376 = vadd.f32 %v374, %v375
    %v377 = vsel %vm367, %v70, 0.0
    %v378 = vadd.f32 %v376, %v377
    %v379 = vsel %vm367, %v74, 0.0
    %v380 = vadd.f32 %v378, %v379
    %v381 = vsel %vm367, %v78, 0.0
    %v382 = vadd.f32 %v380, %v381
    %v383 = vsel %vm367, %v82, 0.0
    %v384 = vadd.f32 %v382, %v383
    %v385 = vsel %vm367, %v86, 0.0
    %v386 = vadd.f32 %v384, %v385
    %v387 = vsel %vm367, %v90, 0.0
    %v388 = vadd.f32 %v386, %v387
    %v389 = vsel %vm367, %v94, 0.0
    %v390 = vadd.f32 %v388, %v389
    %v391 = vsel %vm367, %v98, 0.0
    %v392 = vadd.f32 %v390, %v391
    %v393 = vsel %vm367, %v102, 0.0
    %v394 = vadd.f32 %v392, %v393
    %v395 = vsel %vm367, %v106, 0.0
    %v396 = vadd.f32 %v394, %v395
    %v397 = vsel %vm367, %v110, 0.0
    %v398 = vadd.f32 %v396, %v397
    %v399 = vsel %vm367, %v114, 0.0
    %v400 = vadd.f32 %v398, %v399
    %v401 = vsel %vm367, %v118, 0.0
    %v402 = vadd.f32 %v400, %v401
    %v403 = vsel %vm367, %v122, 0.0
    %v404 = vadd.f32 %v402, %v403
    %v405 = vsel %vm367, %v126, 0.0
    %v406 = vadd.f32 %v404, %v405
    %v407 = vsel %vm367, %v130, 0.0
    %v408 = vadd.f32 %v406, %v407
    %v409 = vsel %vm367, %v134, 0.0
    %v410 = vadd.f32 %v408, %v409
    %v411 = vsel %vm367, %v138, 0.0
    %v412 = vadd.f32 %v410, %v411
    %v413 = vsel %vm367, %v142, 0.0
    %v414 = vadd.f32 %v412, %v413
    %v415 = vsel %vm367, %v146, 0.0
    %v416 = vadd.f32 %v414, %v415
    %v417 = vsel %vm367, %v150, 0.0
    %v418 = vadd.f32 %v416, %v417
    %v419 = vsel %vm367, %v154, 0.0
    %v420 = vadd.f32 %v418, %v419
    %v421 = vsel %vm367, %v158, 0.0
    %v422 = vadd.f32 %v420, %v421
    %v423 = vsel %vm367, %v162, 0.0
    %v424 = vadd.f32 %v422, %v423
    %v425 = vsel %vm367, %v166, 0.0
    %v426 = vadd.f32 %v424, %v425
    %v427 = vsel %vm367, %v170, 0.0
    %v428 = vadd.f32 %v426, %v427
    %v429 = vsel %vm367, %v174, 0.0
    %v430 = vadd.f32 %v428, %v429
    %v431 = vsel %vm367, %v178, 0.0
    %v432 = vadd.f32 %v430, %v431
    %v433 = vsel %vm367, %v182, 0.0
    %v434 = vadd.f32 %v432, %v433
    %v435 = vsel %vm367, %v186, 0.0
    %v436 = vadd.f32 %v434, %v435
    %v437 = vsel %vm367, %v190, 0.0
    %v438 = vadd.f32 %v436, %v437
    %v439 = vsel %vm367, %v194, 0.0
    %v440 = vadd.f32 %v438, %v439
    %v441 = vsel %vm367, %v198, 0.0
    %v442 = vadd.f32 %v440, %v441
    %v443 = vsel %vm367, %v202, 0.0
    %v444 = vadd.f32 %v442, %v443
    %v445 = vsel %vm367, %v206, 0.0
    %v446 = vadd.f32 %v444, %v445
    %v447 = vsel %vm367, %v210, 0.0
    %v448 = vadd.f32 %v446, %v447
    %v449 = vsel %vm367, %v214, 0.0
    %v450 = vadd.f32 %v448, %v449
    %v451 = vsel %vm367, %v218, 0.0
    %v452 = vadd.f32 %v450, %v451
    %v453 = vsel %vm367, %v222, 0.0
    %v454 = vadd.f32 %v452, %v453
    %v455 = vsel %vm367, %v226, 0.0
    %v456 = vadd.f32 %v454, %v455
    %v457 = vsel %vm367, %v230, 0.0
    %v458 = vadd.f32 %v456, %v457
    %v459 = vsel %vm367, %v234, 0.0
    %v460 = vadd.f32 %v458, %v459
    %v461 = vsel %vm367, %v238, 0.0
    %v462 = vadd.f32 %v460, %v461
    %v463 = vsel %vm367, %v242, 0.0
    %v464 = vadd.f32 %v462, %v463
    %v465 = vsel %vm367, %v246, 0.0
    %v466 = vadd.f32 %v464, %v465
    %v467 = vsel %vm367, %v250, 0.0
    %v468 = vadd.f32 %v466, %v467
    %v469 = vsel %vm367, %v254, 0.0
    %v470 = vadd.f32 %v468, %v469
    %v471 = vsel %vm367, %v258, 0.0
    %v472 = vadd.f32 %v470, %v471
    %v473 = vsel %vm367, %v262, 0.0
    %v474 = vadd.f32 %v472, %v473
    %v475 = vsel %vm367, %v266, 0.0
    %v476 = vadd.f32 %v474, %v475
    %v477 = vsel %vm367, %v270, 0.0
    %v478 = vadd.f32 %v476, %v477
    %v479 = vsel %vm367, %v274, 0.0
    %v480 = vadd.f32 %v478, %v479
    %v481 = vsel %vm367, %v278, 0.0
    %v482 = vadd.f32 %v480, %v481
    %v483 = vsel %vm367, %v282, 0.0
    %v484 = vadd.f32 %v482, %v483
    %v485 = vsel %vm367, %v286, 0.0
    %v486 = vadd.f32 %v484, %v485
    %v487 = vsel %vm367, %v290, 0.0
    %v488 = vadd.f32 %v486, %v487
    %v489 = vsel %vm367, %v294, 0.0
    %v490 = vadd.f32 %v488, %v489
    %v491 = vsel %vm367, %v298, 0.0
    %v492 = vadd.f32 %v490, %v491
    %v493 = vsel %vm367, %v302, 0.0
    %v494 = vadd.f32 %v492, %v493
    %495 = vadd.xlane.f32.xlu0 %v494
    %v496 = vpop.xlane.xlu0 %495
    %v497 = vrcp.pop 8192.0
    %v498 = vmul.f32 %v496, %v497
    %v500 = vlaneseq
    %v501 = vshrl.u32 %v500, 7
    %v502 = vsub.s32 0, %v501
    %v503 = vrot.slane %v498, %v502
    %v505 = vsub.f32 %v31, %v503
    %v506 = vsub.f32 %v32, %v503
    %v507 = vsub.f32 %v33, %v503
    %v508 = vsub.f32 %v34, %v503
    %v509 = vsub.f32 %v35, %v503
    %v510 = vsub.f32 %v36, %v503
    %v511 = vsub.f32 %v37, %v503
    %v512 = vsub.f32 %v38, %v503
    %v513 = vmul.f32 %v505, %v505
    %v514 = vmul.f32 %v506, %v506
    %v515 = vmul.f32 %v507, %v507
    %v516 = vmul.f32 %v508, %v508
    %v517 = vmul.f32 %v509, %v509
    %v518 = vmul.f32 %v510, %v510
    %v519 = vmul.f32 %v511, %v511
    %v520 = vmul.f32 %v512, %v512
    %v529 = vlaneseq
    %v530 = vshrl.u32 %v529, 7
    %v531 = vsub.s32 0, %v530
    %v532 = vrot.slane %v513, %v531
    %v533 = vlaneseq
    %v534 = vshrl.u32 %v533, 7
    %v535 = vsub.s32 1, %v534
    %v536 = vrot.slane %v513, %v535
    %v537 = vlaneseq
    %v538 = vshrl.u32 %v537, 7
    %v539 = vsub.s32 2, %v538
    %v540 = vrot.slane %v513, %v539
    %v541 = vlaneseq
    %v542 = vshrl.u32 %v541, 7
    %v543 = vsub.s32 3, %v542
    %v544 = vrot.slane %v513, %v543
    %v545 = vlaneseq
    %v546 = vshrl.u32 %v545, 7
    %v547 = vsub.s32 4, %v546
    %v548 = vrot.slane %v513, %v547
    %v549 = vlaneseq
    %v550 = vshrl.u32 %v549, 7
    %v551 = vsub.s32 5, %v550
    %v552 = vrot.slane %v513, %v551
    %v553 = vlaneseq
    %v554 = vshrl.u32 %v553, 7
    %v555 = vsub.s32 6, %v554
    %v556 = vrot.slane %v513, %v555
    %v557 = vlaneseq
    %v558 = vshrl.u32 %v557, 7
    %v559 = vsub.s32 7, %v558
    %v560 = vrot.slane %v513, %v559
    %v561 = vlaneseq
    %v562 = vshrl.u32 %v561, 7
    %v563 = vsub.s32 0, %v562
    %v564 = vrot.slane %v514, %v563
    %v565 = vlaneseq
    %v566 = vshrl.u32 %v565, 7
    %v567 = vsub.s32 1, %v566
    %v568 = vrot.slane %v514, %v567
    %v569 = vlaneseq
    %v570 = vshrl.u32 %v569, 7
    %v571 = vsub.s32 2, %v570
    %v572 = vrot.slane %v514, %v571
    %v573 = vlaneseq
    %v574 = vshrl.u32 %v573, 7
    %v575 = vsub.s32 3, %v574
    %v576 = vrot.slane %v514, %v575
    %v577 = vlaneseq
    %v578 = vshrl.u32 %v577, 7
    %v579 = vsub.s32 4, %v578
    %v580 = vrot.slane %v514, %v579
    %v581 = vlaneseq
    %v582 = vshrl.u32 %v581, 7
    %v583 = vsub.s32 5, %v582
    %v584 = vrot.slane %v514, %v583
    %v585 = vlaneseq
    %v586 = vshrl.u32 %v585, 7
    %v587 = vsub.s32 6, %v586
    %v588 = vrot.slane %v514, %v587
    %v589 = vlaneseq
    %v590 = vshrl.u32 %v589, 7
    %v591 = vsub.s32 7, %v590
    %v592 = vrot.slane %v514, %v591
    %v593 = vlaneseq
    %v594 = vshrl.u32 %v593, 7
    %v595 = vsub.s32 0, %v594
    %v596 = vrot.slane %v515, %v595
    %v597 = vlaneseq
    %v598 = vshrl.u32 %v597, 7
    %v599 = vsub.s32 1, %v598
    %v600 = vrot.slane %v515, %v599
    %v601 = vlaneseq
    %v602 = vshrl.u32 %v601, 7
    %v603 = vsub.s32 2, %v602
    %v604 = vrot.slane %v515, %v603
    %v605 = vlaneseq
    %v606 = vshrl.u32 %v605, 7
    %v607 = vsub.s32 3, %v606
    %v608 = vrot.slane %v515, %v607
    %v609 = vlaneseq
    %v610 = vshrl.u32 %v609, 7
    %v611 = vsub.s32 4, %v610
    %v612 = vrot.slane %v515, %v611
    %v613 = vlaneseq
    %v614 = vshrl.u32 %v613, 7
    %v615 = vsub.s32 5, %v614
    %v616 = vrot.slane %v515, %v615
    %v617 = vlaneseq
    %v618 = vshrl.u32 %v617, 7
    %v619 = vsub.s32 6, %v618
    %v620 = vrot.slane %v515, %v619
    %v621 = vlaneseq
    %v622 = vshrl.u32 %v621, 7
    %v623 = vsub.s32 7, %v622
    %v624 = vrot.slane %v515, %v623
    %v625 = vlaneseq
    %v626 = vshrl.u32 %v625, 7
    %v627 = vsub.s32 0, %v626
    %v628 = vrot.slane %v516, %v627
    %v629 = vlaneseq
    %v630 = vshrl.u32 %v629, 7
    %v631 = vsub.s32 1, %v630
    %v632 = vrot.slane %v516, %v631
    %v633 = vlaneseq
    %v634 = vshrl.u32 %v633, 7
    %v635 = vsub.s32 2, %v634
    %v636 = vrot.slane %v516, %v635
    %v637 = vlaneseq
    %v638 = vshrl.u32 %v637, 7
    %v639 = vsub.s32 3, %v638
    %v640 = vrot.slane %v516, %v639
    %v641 = vlaneseq
    %v642 = vshrl.u32 %v641, 7
    %v643 = vsub.s32 4, %v642
    %v644 = vrot.slane %v516, %v643
    %v645 = vlaneseq
    %v646 = vshrl.u32 %v645, 7
    %v647 = vsub.s32 5, %v646
    %v648 = vrot.slane %v516, %v647
    %v649 = vlaneseq
    %v650 = vshrl.u32 %v649, 7
    %v651 = vsub.s32 6, %v650
    %v652 = vrot.slane %v516, %v651
    %v653 = vlaneseq
    %v654 = vshrl.u32 %v653, 7
    %v655 = vsub.s32 7, %v654
    %v656 = vrot.slane %v516, %v655
    %v657 = vlaneseq
    %v658 = vshrl.u32 %v657, 7
    %v659 = vsub.s32 0, %v658
    %v660 = vrot.slane %v517, %v659
    %v661 = vlaneseq
    %v662 = vshrl.u32 %v661, 7
    %v663 = vsub.s32 1, %v662
    %v664 = vrot.slane %v517, %v663
    %v665 = vlaneseq
    %v666 = vshrl.u32 %v665, 7
    %v667 = vsub.s32 2, %v666
    %v668 = vrot.slane %v517, %v667
    %v669 = vlaneseq
    %v670 = vshrl.u32 %v669, 7
    %v671 = vsub.s32 3, %v670
    %v672 = vrot.slane %v517, %v671
    %v673 = vlaneseq
    %v674 = vshrl.u32 %v673, 7
    %v675 = vsub.s32 4, %v674
    %v676 = vrot.slane %v517, %v675
    %v677 = vlaneseq
    %v678 = vshrl.u32 %v677, 7
    %v679 = vsub.s32 5, %v678
    %v680 = vrot.slane %v517, %v679
    %v681 = vlaneseq
    %v682 = vshrl.u32 %v681, 7
    %v683 = vsub.s32 6, %v682
    %v684 = vrot.slane %v517, %v683
    %v685 = vlaneseq
    %v686 = vshrl.u32 %v685, 7
    %v687 = vsub.s32 7, %v686
    %v688 = vrot.slane %v517, %v687
    %v689 = vlaneseq
    %v690 = vshrl.u32 %v689, 7
    %v691 = vsub.s32 0, %v690
    %v692 = vrot.slane %v518, %v691
    %v693 = vlaneseq
    %v694 = vshrl.u32 %v693, 7
    %v695 = vsub.s32 1, %v694
    %v696 = vrot.slane %v518, %v695
    %v697 = vlaneseq
    %v698 = vshrl.u32 %v697, 7
    %v699 = vsub.s32 2, %v698
    %v700 = vrot.slane %v518, %v699
    %v701 = vlaneseq
    %v702 = vshrl.u32 %v701, 7
    %v703 = vsub.s32 3, %v702
    %v704 = vrot.slane %v518, %v703
    %v705 = vlaneseq
    %v706 = vshrl.u32 %v705, 7
    %v707 = vsub.s32 4, %v706
    %v708 = vrot.slane %v518, %v707
    %v709 = vlaneseq
    %v710 = vshrl.u32 %v709, 7
    %v711 = vsub.s32 5, %v710
    %v712 = vrot.slane %v518, %v711
    %v713 = vlaneseq
    %v714 = vshrl.u32 %v713, 7
    %v715 = vsub.s32 6, %v714
    %v716 = vrot.slane %v518, %v715
    %v717 = vlaneseq
    %v718 = vshrl.u32 %v717, 7
    %v719 = vsub.s32 7, %v718
    %v720 = vrot.slane %v518, %v719
    %v721 = vlaneseq
    %v722 = vshrl.u32 %v721, 7
    %v723 = vsub.s32 0, %v722
    %v724 = vrot.slane %v519, %v723
    %v725 = vlaneseq
    %v726 = vshrl.u32 %v725, 7
    %v727 = vsub.s32 1, %v726
    %v728 = vrot.slane %v519, %v727
    %v729 = vlaneseq
    %v730 = vshrl.u32 %v729, 7
    %v731 = vsub.s32 2, %v730
    %v732 = vrot.slane %v519, %v731
    %v733 = vlaneseq
    %v734 = vshrl.u32 %v733, 7
    %v735 = vsub.s32 3, %v734
    %v736 = vrot.slane %v519, %v735
    %v737 = vlaneseq
    %v738 = vshrl.u32 %v737, 7
    %v739 = vsub.s32 4, %v738
    %v740 = vrot.slane %v519, %v739
    %v741 = vlaneseq
    %v742 = vshrl.u32 %v741, 7
    %v743 = vsub.s32 5, %v742
    %v744 = vrot.slane %v519, %v743
    %v745 = vlaneseq
    %v746 = vshrl.u32 %v745, 7
    %v747 = vsub.s32 6, %v746
    %v748 = vrot.slane %v519, %v747
    %v749 = vlaneseq
    %v750 = vshrl.u32 %v749, 7
    %v751 = vsub.s32 7, %v750
    %v752 = vrot.slane %v519, %v751
    %v753 = vlaneseq
    %v754 = vshrl.u32 %v753, 7
    %v755 = vsub.s32 0, %v754
    %v756 = vrot.slane %v520, %v755
    %v757 = vlaneseq
    %v758 = vshrl.u32 %v757, 7
    %v759 = vsub.s32 1, %v758
    %v760 = vrot.slane %v520, %v759
    %v761 = vlaneseq
    %v762 = vshrl.u32 %v761, 7
    %v763 = vsub.s32 2, %v762
    %v764 = vrot.slane %v520, %v763
    %v765 = vlaneseq
    %v766 = vshrl.u32 %v765, 7
    %v767 = vsub.s32 3, %v766
    %v768 = vrot.slane %v520, %v767
    %v769 = vlaneseq
    %v770 = vshrl.u32 %v769, 7
    %v771 = vsub.s32 4, %v770
    %v772 = vrot.slane %v520, %v771
    %v773 = vlaneseq
    %v774 = vshrl.u32 %v773, 7
    %v775 = vsub.s32 5, %v774
    %v776 = vrot.slane %v520, %v775
    %v777 = vlaneseq
    %v778 = vshrl.u32 %v777, 7
    %v779 = vsub.s32 6, %v778
    %v780 = vrot.slane %v520, %v779
    %v781 = vlaneseq
    %v782 = vshrl.u32 %v781, 7
    %v783 = vsub.s32 7, %v782
    %v784 = vrot.slane %v520, %v783
    %v849 = vsel %vm367, %v532, 0.0
    %v850 = vsel %vm367, %v536, 0.0
    %v851 = vadd.f32 %v849, %v850
    %v852 = vsel %vm367, %v540, 0.0
    %v853 = vadd.f32 %v851, %v852
    %v854 = vsel %vm367, %v544, 0.0
    %v855 = vadd.f32 %v853, %v854
    %v856 = vsel %vm367, %v548, 0.0
    %v857 = vadd.f32 %v855, %v856
    %v858 = vsel %vm367, %v552, 0.0
    %v859 = vadd.f32 %v857, %v858
    %v860 = vsel %vm367, %v556, 0.0
    %v861 = vadd.f32 %v859, %v860
    %v862 = vsel %vm367, %v560, 0.0
    %v863 = vadd.f32 %v861, %v862
    %v864 = vsel %vm367, %v564, 0.0
    %v865 = vadd.f32 %v863, %v864
    %v866 = vsel %vm367, %v568, 0.0
    %v867 = vadd.f32 %v865, %v866
    %v868 = vsel %vm367, %v572, 0.0
    %v869 = vadd.f32 %v867, %v868
    %v870 = vsel %vm367, %v576, 0.0
    %v871 = vadd.f32 %v869, %v870
    %v872 = vsel %vm367, %v580, 0.0
    %v873 = vadd.f32 %v871, %v872
    %v874 = vsel %vm367, %v584, 0.0
    %v875 = vadd.f32 %v873, %v874
    %v876 = vsel %vm367, %v588, 0.0
    %v877 = vadd.f32 %v875, %v876
    %v878 = vsel %vm367, %v592, 0.0
    %v879 = vadd.f32 %v877, %v878
    %v880 = vsel %vm367, %v596, 0.0
    %v881 = vadd.f32 %v879, %v880
    %v882 = vsel %vm367, %v600, 0.0
    %v883 = vadd.f32 %v881, %v882
    %v884 = vsel %vm367, %v604, 0.0
    %v885 = vadd.f32 %v883, %v884
    %v886 = vsel %vm367, %v608, 0.0
    %v887 = vadd.f32 %v885, %v886
    %v888 = vsel %vm367, %v612, 0.0
    %v889 = vadd.f32 %v887, %v888
    %v890 = vsel %vm367, %v616, 0.0
    %v891 = vadd.f32 %v889, %v890
    %v892 = vsel %vm367, %v620, 0.0
    %v893 = vadd.f32 %v891, %v892
    %v894 = vsel %vm367, %v624, 0.0
    %v895 = vadd.f32 %v893, %v894
    %v896 = vsel %vm367, %v628, 0.0
    %v897 = vadd.f32 %v895, %v896
    %v898 = vsel %vm367, %v632, 0.0
    %v899 = vadd.f32 %v897, %v898
    %v900 = vsel %vm367, %v636, 0.0
    %v901 = vadd.f32 %v899, %v900
    %v902 = vsel %vm367, %v640, 0.0
    %v903 = vadd.f32 %v901, %v902
    %v904 = vsel %vm367, %v644, 0.0
    %v905 = vadd.f32 %v903, %v904
    %v906 = vsel %vm367, %v648, 0.0
    %v907 = vadd.f32 %v905, %v906
    %v908 = vsel %vm367, %v652, 0.0
    %v909 = vadd.f32 %v907, %v908
    %v910 = vsel %vm367, %v656, 0.0
    %v911 = vadd.f32 %v909, %v910
    %v912 = vsel %vm367, %v660, 0.0
    %v913 = vadd.f32 %v911, %v912
    %v914 = vsel %vm367, %v664, 0.0
    %v915 = vadd.f32 %v913, %v914
    %v916 = vsel %vm367, %v668, 0.0
    %v917 = vadd.f32 %v915, %v916
    %v918 = vsel %vm367, %v672, 0.0
    %v919 = vadd.f32 %v917, %v918
    %v920 = vsel %vm367, %v676, 0.0
    %v921 = vadd.f32 %v919, %v920
    %v922 = vsel %vm367, %v680, 0.0
    %v923 = vadd.f32 %v921, %v922
    %v924 = vsel %vm367, %v684, 0.0
    %v925 = vadd.f32 %v923, %v924
    %v926 = vsel %vm367, %v688, 0.0
    %v927 = vadd.f32 %v925, %v926
    %v928 = vsel %vm367, %v692, 0.0
    %v929 = vadd.f32 %v927, %v928
    %v930 = vsel %vm367, %v696, 0.0
    %v931 = vadd.f32 %v929, %v930
    %v932 = vsel %vm367, %v700, 0.0
    %v933 = vadd.f32 %v931, %v932
    %v934 = vsel %vm367, %v704, 0.0
    %v935 = vadd.f32 %v933, %v934
    %v936 = vsel %vm367, %v708, 0.0
    %v937 = vadd.f32 %v935, %v936
    %v938 = vsel %vm367, %v712, 0.0
    %v939 = vadd.f32 %v937, %v938
    %v940 = vsel %vm367, %v716, 0.0
    %v941 = vadd.f32 %v939, %v940
    %v942 = vsel %vm367, %v720, 0.0
    %v943 = vadd.f32 %v941, %v942
    %v944 = vsel %vm367, %v724, 0.0
    %v945 = vadd.f32 %v943, %v944
    %v946 = vsel %vm367, %v728, 0.0
    %v947 = vadd.f32 %v945, %v946
    %v948 = vsel %vm367, %v732, 0.0
    %v949 = vadd.f32 %v947, %v948
    %v950 = vsel %vm367, %v736, 0.0
    %v951 = vadd.f32 %v949, %v950
    %v952 = vsel %vm367, %v740, 0.0
    %v953 = vadd.f32 %v951, %v952
    %v954 = vsel %vm367, %v744, 0.0
    %v955 = vadd.f32 %v953, %v954
    %v956 = vsel %vm367, %v748, 0.0
    %v957 = vadd.f32 %v955, %v956
    %v958 = vsel %vm367, %v752, 0.0
    %v959 = vadd.f32 %v957, %v958
    %v960 = vsel %vm367, %v756, 0.0
    %v961 = vadd.f32 %v959, %v960
    %v962 = vsel %vm367, %v760, 0.0
    %v963 = vadd.f32 %v961, %v962
    %v964 = vsel %vm367, %v764, 0.0
    %v965 = vadd.f32 %v963, %v964
    %v966 = vsel %vm367, %v768, 0.0
    %v967 = vadd.f32 %v965, %v966
    %v968 = vsel %vm367, %v772, 0.0
    %v969 = vadd.f32 %v967, %v968
    %v970 = vsel %vm367, %v776, 0.0
    %v971 = vadd.f32 %v969, %v970
    %v972 = vsel %vm367, %v780, 0.0
    %v973 = vadd.f32 %v971, %v972
    %v974 = vsel %vm367, %v784, 0.0
    %v975 = vadd.f32 %v973, %v974
    %976 = vadd.xlane.f32.xlu0 %v975
    %v977 = vpop.xlane.xlu0 %976
    %v978 = vmul.f32 %v977, %v497
    %v979 = vadd.f32 %v978, 1e-05
    %v980 = vrsqrt.pop %v979
    %v981 = vld [vmem:[#allocation2] sm:$0x1]
    %v982 = vmul.f32 %v980, %v981
    %984 = vset.pattern.permute.xlu0 0
    %985 = vperm.xlu0 %984, %v982
    %v986 = vpop.permute.xlu0 %985
    %v987 = vlaneseq
    %v988 = vshrl.u32 %v987, 7
    %v989 = vsub.s32 0, %v988
    %v990 = vrot.slane %v986, %v989
    %v992 = vmul.f32 %v505, %v990
    %v993 = vmul.f32 %v506, %v990
    %v994 = vmul.f32 %v507, %v990
    %v995 = vmul.f32 %v508, %v990
    %v996 = vmul.f32 %v509, %v990
    %v997 = vmul.f32 %v510, %v990
    %v998 = vmul.f32 %v511, %v990
    %v999 = vmul.f32 %v512, %v990
    %v1000 = vld [vmem:[#allocation3] sm:$0x1]
    %1002 = vset.pattern.permute.xlu0 0
    %1003 = vperm.xlu0 %1002, %v1000
    %v1004 = vpop.permute.xlu0 %1003
    %v1006 = vlaneseq
    %v1007 = vshrl.u32 %v1006, 7
    %v1008 = vsub.s32 0, %v1007
    %v1009 = vrot.slane %v1004, %v1008
    %v1010 = vadd.f32 %v992, %v1009
    %v1011 = vadd.f32 %v993, %v1009
    %v1012 = vadd.f32 %v994, %v1009
    %v1013 = vadd.f32 %v995, %v1009
    %v1014 = vadd.f32 %v996, %v1009
    %v1015 = vadd.f32 %v997, %v1009
    %v1016 = vadd.f32 %v998, %v1009
    %v1017 = vadd.f32 %v999, %v1009
    %v1018 = vmax.f32 %v1010, 0.0
    %v1019 = vmax.f32 %v1011, 0.0
    %v1020 = vmax.f32 %v1012, 0.0
    %v1021 = vmax.f32 %v1013, 0.0
    %v1022 = vmax.f32 %v1014, 0.0
    %v1023 = vmax.f32 %v1015, 0.0
    %v1024 = vmax.f32 %v1016, 0.0
    %v1025 = vmax.f32 %v1017, 0.0
    %1026 = vst [vmem:[#allocation7] sm:$0xff] %v1018
    %1027 = vst [vmem:[#allocation7 + $0x8] sm:$0xff] %v1019
    %1028 = vst [vmem:[#allocation7 + $0x10] sm:$0xff] %v1020
    %1029 = vst [vmem:[#allocation7 + $0x18] sm:$0xff] %v1021
    %1030 = vst [vmem:[#allocation7 + $0x20] sm:$0xff] %v1022
    %1031 = vst [vmem:[#allocation7 + $0x28] sm:$0xff] %v1023
    %1032 = vst [vmem:[#allocation7 + $0x30] sm:$0xff] %v1024
    %1033 = vst [vmem:[#allocation7 + $0x38] sm:$0xff] %v1025
    // Predicated region
    $region18: #{tpu_custom_call.1} parent=1 // pred_check
      _
    $region19: #{tpu_custom_call.1} parent=1 // pred_check_branch
      %1035 = sbr.rel (0) target = $region21
    $region20: #{tpu_custom_call.1} parent=1 // pred_region
      %s1037 = ssub.s32 1024, 1024
      %1038 = vsyncadd [#allocation6], %s1037
      %s1040 = sshll.u32 [#allocation7], 4
      %s1041 = int_to_ptr.vmem [resolvable:$true] %s1040
      %1043 = dma.vmem_to_hbm [thread:$0]  %s1041, 1024, %s3, [#allocation6]
    $region21: #{tpu_custom_call.1} parent=1 // pred_fallthru
      _
    // Predicated region
    $region22: #{tpu_custom_call.1} parent=1 // pred_check
      _
    $region23: #{tpu_custom_call.1} parent=1 // pred_check_branch
      %1045 = sbr.rel (0) target = $region25
    $region24: #{tpu_custom_call.1} parent=1 // pred_region
      %1046 = dma.done [#allocation6], 1024
    $region25: #{tpu_custom_call.1} parent=1 // pred_fallthru
      _
    %1047 = vsyncpa [#allocation5], 1
    %1048 = vsyncpa [#allocation6], 1

</llo_original>
